<compile_context>
chip_gen: v7x
topology: tpu7x:2x2x1
jax: 0.10.0
libtpu: 0.0.40
codegen_flags: <defaults>
</compile_context>

<pallas_src>
import jax
import jax.numpy as jnp
from jax.experimental import pallas as pl
from jax.experimental.pallas import tpu as pltpu

_LANE = 128
_SUBLANE = 8


def _round_up(x: int, m: int) -> int:
    return (x + m - 1) // m * m


def _choose_tile_n(n: int, d: int, *, lane_dense: bool, itemsize: int = 4,
                   per_buffer_bytes: int = 16 * 1024 * 1024,
                   min_steps: int = 8) -> int:
    """Row tile that fits a lane-padding-aware VMEM budget, keeps >= min_steps
    grid steps for moderate N, and never drops below 512 rows unless N is small."""
    d_pad = _round_up(d, _LANE)
    # Real per-row VMEM cost: X row padded to 128 lanes + this row's share of
    # the output buffer (lane-dense: ~8*4 B/row; skinny (tile_n,1): a full
    # 128-lane padded row, 512 B/row).
    bytes_per_row = d_pad * itemsize + (_SUBLANE * itemsize if lane_dense
                                        else _LANE * itemsize)
    vmem_rows = max(_SUBLANE, per_buffer_bytes // bytes_per_row)
    rows_for_steps = max(512, pl.cdiv(n, min_steps))
    tile = max(_SUBLANE, min(vmem_rows, rows_for_steps, _round_up(n, _SUBLANE)))
    if tile >= _LANE:
        tile = (tile // _LANE) * _LANE      # lane-aligned (enables dense stores)
    else:
        tile = _round_up(tile, _SUBLANE)    # always sublane-aligned
    return tile


def _make_kernel(lane_dense: bool):
    def linear_kernel(x_ref, w_ref, b_ref, o_ref):
        # x_ref: (TILE_N, D) VMEM; w_ref: (1, D) VMEM (resident across grid);
        # b_ref: (1, 1) SMEM scalar.
        x = x_ref[...]                                   # (TILE_N, D)
        w = w_ref[...]                                   # (1, D) broadcasts over rows
        # out_features == 1: VPU multiply + XLU lane reduction, f32 accumulation.
        acc = jnp.sum(x * w, axis=-1, keepdims=True)     # (TILE_N, 1) f32
        y = acc + b_ref[0, 0]
        if lane_dense:
            # XLU transpose so the store is a full-lane vst into a (1, TILE_N)
            # block instead of TILE_N/8 one-valid-lane masked stores.
            o_ref[...] = y.T.astype(o_ref.dtype)         # (1, TILE_N)
        else:
            o_ref[...] = y.astype(o_ref.dtype)           # (TILE_N, 1)
    return linear_kernel


def linear_forward(x, w, b, *, tile_n=None):
    """x: (N, D) f32, w: (1, D) f32, b: (1, 1) f32 -> (N, 1) f32."""
    N, D = x.shape
    assert w.shape == (1, D)
    assert b.shape == (1, 1)
    itemsize = x.dtype.itemsize

    # Lane-dense output is the store-slot win for narrow D; for wide D the
    # loads dominate and the plain (tile_n, 1) output block is fine.
    lane_dense_pref = D <= 512

    if tile_n is None:
        tile_n = _choose_tile_n(N, D, lane_dense=lane_dense_pref, itemsize=itemsize)
    tile_n = max(_SUBLANE,
                 _round_up(min(tile_n, _round_up(N, _SUBLANE)), _SUBLANE))
    # Lane-dense block (1, tile_n) needs tile_n % 128 == 0 (last-dim constraint).
    lane_dense = lane_dense_pref and (tile_n % _LANE == 0)

    num_tiles = pl.cdiv(N, tile_n)          # no wrapper-side padding of X

    # Lane/sublane-aware VMEM accounting (double-buffered X and out, the
    # resident W conservatively double-counted) + margin for internal scratch.
    d_pad = _round_up(D, _LANE)
    x_buf = tile_n * d_pad * itemsize
    w_buf = _SUBLANE * d_pad * itemsize
    o_buf = (_SUBLANE * _round_up(tile_n, _LANE) * itemsize if lane_dense
             else tile_n * _LANE * itemsize)
    vmem_needed = 2 * (x_buf + w_buf + o_buf) + (2 << 20)
    vmem_limit = int(max(32 << 20, _round_up(vmem_needed, 1 << 20)))

    if lane_dense:
        out_shape = jax.ShapeDtypeStruct((1, num_tiles * tile_n), x.dtype)
        out_spec = pl.BlockSpec((1, tile_n), lambda i: (0, i))
    else:
        out_shape = jax.ShapeDtypeStruct((N, 1), x.dtype)
        out_spec = pl.BlockSpec((tile_n, 1), lambda i: (i, 0))

    out = pl.pallas_call(
        _make_kernel(lane_dense),
        out_shape=out_shape,
        grid_spec=pl.GridSpec(
            grid=(num_tiles,),
            in_specs=[
                # X: one (TILE_N, D) row tile per step (double-buffered DMA);
                # the final block may overhang N -- undefined rows are harmless.
                pl.BlockSpec((tile_n, D), lambda i: (i, 0)),
                # W: same block every step -> stays resident in VMEM.
                pl.BlockSpec((1, D), lambda i: (0, 0)),
                # bias: scalar in SMEM (no padded VMEM tile, no vector-load slot).
                pl.BlockSpec(memory_space=pltpu.MemorySpace.SMEM),
            ],
            out_specs=out_spec,
        ),
        compiler_params=pltpu.CompilerParams(
            dimension_semantics=("parallel",),   # independent row tiles
            vmem_limit_bytes=vmem_limit,
        ),
        cost_estimate=pl.CostEstimate(
            flops=2 * N * D,
            transcendentals=0,
            bytes_accessed=itemsize * (N * D + D + 1 + N),
        ),
    )(x, w, b)

    if lane_dense:
        out = out.reshape(num_tiles * tile_n, 1)[:N]     # free reshape + slice
    return out


if __name__ == "__main__":
    # LazyLinear(1): out_features=1, in_features inferred from the input.
    key = jax.random.PRNGKey(0)
    kx, kw, kb, kx2 = jax.random.split(key, 4)

    D = 32
    bound = 1.0 / jnp.sqrt(jnp.float32(D))
    w = jax.random.uniform(kw, (1, D), dtype=jnp.float32, minval=-bound, maxval=bound)
    b = jax.random.uniform(kb, (1, 1), dtype=jnp.float32, minval=-bound, maxval=bound)

    # Case 1: tiny batch, small forced tile -> multi-step grid with an
    # overhanging (partial) final block, skinny (tile_n, 1) output path.
    N1 = 50
    x1 = jax.random.normal(kx, (N1, D), dtype=jnp.float32)
    out1 = jax.block_until_ready(linear_forward(x1, w, b, tile_n=16))
    ref1 = x1 @ w.T + b
    assert out1.shape == (N1, 1)
    assert jnp.allclose(out1, ref1, atol=1e-5, rtol=1e-5)

    # Case 2: lane-dense output path (tile_n = 128), multi-step grid with a
    # partial final block over the unpadded input.
    N2 = 300
    x2 = jax.random.normal(kx2, (N2, D), dtype=jnp.float32)
    out2 = jax.block_until_ready(linear_forward(x2, w, b, tile_n=128))
    ref2 = x2 @ w.T + b
    assert out2.shape == (N2, 1)
    assert jnp.allclose(out2, ref2, atol=1e-5, rtol=1e-5)

    print("KERNEL_OK")
</pallas_src>

<mosaic_0001>
module attributes {stable_mosaic.version = 11 : i64} {
  func.func @linear_kernel(%arg0: i32, %arg1: memref<16x32xf32, #tpu.memory_space<vmem>>, %arg2: memref<1x32xf32, #tpu.memory_space<vmem>>, %arg3: memref<1x1xf32, #tpu.memory_space<smem>>, %arg4: memref<16x1xf32, #tpu.memory_space<vmem>>) attributes {dimension_semantics = [#tpu.dimension_semantics<parallel>], iteration_bounds = array<i64: 4>, scalar_prefetch = 0 : i64, scratch_operands = 0 : i64, tpu.core_type = #tpu.core_type<tc>, window_params = [{transform_indices = @transform_0, window_bounds = array<i64: 16, 32>}, {pipeline_mode = #tpu.pipeline_mode<synchronous>, transform_indices = @transform_1, window_bounds = array<i64: 1, 32>}, {transform_indices = @transform_2, window_bounds = array<i64: 1, 1>}, {transform_indices = @transform_3, window_bounds = array<i64: 16, 1>}]} {
    %c0 = arith.constant 0 : index
    %c0_0 = arith.constant 0 : index
    %0 = vector.load %arg1[%c0, %c0_0] : memref<16x32xf32, #tpu.memory_space<vmem>>, vector<16x32xf32>
    %c0_1 = arith.constant 0 : index
    %c0_2 = arith.constant 0 : index
    %1 = vector.load %arg2[%c0_1, %c0_2] : memref<1x32xf32, #tpu.memory_space<vmem>>, vector<1x32xf32>
    %2 = vector.broadcast %1 : vector<1x32xf32> to vector<16x32xf32>
    %3 = arith.mulf %0, %2 : vector<16x32xf32>
    %cst = arith.constant dense<0.000000e+00> : vector<16xf32>
    %4 = vector.multi_reduction <add>, %3, %cst [1] : vector<16x32xf32> to vector<16xf32>
    %5 = vector.shape_cast %4 : vector<16xf32> to vector<16x1xf32>
    %c0_3 = arith.constant 0 : index
    %c0_4 = arith.constant 0 : index
    %6 = memref.load %arg3[%c0_3, %c0_4] : memref<1x1xf32, #tpu.memory_space<smem>>
    %7 = vector.broadcast %6 : f32 to vector<16x1xf32>
    %8 = arith.addf %5, %7 : vector<16x1xf32>
    %c0_5 = arith.constant 0 : index
    %c0_6 = arith.constant 0 : index
    %9 = vector.load %arg4[%c0_5, %c0_6] : memref<16x1xf32, #tpu.memory_space<vmem>>, vector<16x1xf32>
    tpu.vector_store %arg4[%c0_5, %c0_6], %8 {strides = array<i32>} : memref<16x1xf32, #tpu.memory_space<vmem>>, vector<16x1xf32>,
    return
  }
  func.func @transform_0(%arg0: i32) -> (i32, i32) {
    %c0_i32 = arith.constant 0 : i32
    %c0_i32_0 = arith.constant 0 : i32
    return %arg0, %c0_i32 : i32, i32
  }
  func.func @transform_1(%arg0: i32) -> (i32, i32) {
    %c0_i32 = arith.constant 0 : i32
    %c0_i32_0 = arith.constant 0 : i32
    %c0_i32_1 = arith.constant 0 : i32
    return %c0_i32, %c0_i32_0 : i32, i32
  }
  func.func @transform_2(%arg0: i32) -> (i32, i32) {
    %c0_i32 = arith.constant 0 : i32
    %c0_i32_0 = arith.constant 0 : i32
    %c0_i32_1 = arith.constant 0 : i32
    return %c0_i32, %c0_i32_0 : i32, i32
  }
  func.func @transform_3(%arg0: i32) -> (i32, i32) {
    %c0_i32 = arith.constant 0 : i32
    %c0_i32_0 = arith.constant 0 : i32
    return %arg0, %c0_i32 : i32, i32
  }
}

</mosaic_0001>

<llo_original>
// kernel: tpu_custom_call.1
$region0: #{tpu_custom_call.1}
  #allocation0 [shape = 'u32[]', space=smem, size = 0x4, offset = 0x4, fixed_abs, tag = 'smem constant byte address 0x4 - core index']
  #allocation1 [shape = 'u32[144,128]{1,0:T(1,128)}', space=vmem, size = 0x12000, scoped, tag = 'internal scratch']
  #allocation2 [shape = 'f32[1,1]{1,0:T(1,128)S(6)}', space=smem, size = 0x200, scoped, tag = 'scoped memory for tpu_custom_call.1']
  %s0 = inlined_call_operand.vmem [shape: f32[50,32], index: 0, kind: input, shape index: {}]
  %s1 = inlined_call_operand.vmem [shape: f32[1,32], index: 1, kind: input, shape index: {}]
  %s2 = inlined_call_operand.<no memory space> [shape: f32[1,1], index: 2, kind: input, shape index: {}]
  %s3 = inlined_call_operand.vmem [shape: f32[50,1], index: 3, kind: output, shape index: {}]
  %s4 = sld [smem:[#allocation0]]
  $region93: #{tpu_custom_call.1} parent=0
    _
  %s6 = ssub.s32 1, %s4
  %s7 = scalar_select 0, %s6, %s4
  %8 = sst [smem:[#allocation2]] %s2
  $region1: #{tpu_custom_call.1} parent=0
    #allocation3 [shape = 'u8[16384]{0}', space=vmem, size = 0x4000, scoped, tag = 'output window, operand 0']
    loop: start=0, step=1, limit=6
    $region2: #{tpu_custom_call.1} parent=1 // loop_pre_header
      _
    $region3: #{tpu_custom_call.1} parent=1 // loop_header
      %s10 = sphi 0, %s14
      %p11 = scmp.ge.s32.totalorder %s10, 6
      %s20 = sphi 0, %s22
      %s23 = sphi 0, %s20
      %s24 = sphi 0, %s23
      %s40 = sphi 0, %s24
      %s44 = sphi 0, %s44
      %s46 = sphi 0, %s44
      %s47 = sphi 0, %s46
      %s61 = sphi 0, %s47
      %s65 = sphi 0, %s65
      %s67 = sphi 0, %s65
      %s68 = sphi 0, %s67
      %s82 = sphi 0, %s68
      %s88 = sphi 0, %s90
      %s91 = sphi 0, %s88
      %s92 = sphi 0, %s91
      %s108 = sphi 0, %s92
    $region4: #{tpu_custom_call.1} parent=1 // loop_header_branch
      %13 = sbr.rel (%p11) target = $region8
    $region5: #{tpu_custom_call.1} parent=1 // loop_body
      %s15 = ssub.s32 %s10, 1
      %s16 = ssub.s32 %s10, 2
      %s17 = sadd.s32 %s10, 1
      %s18 = ssub.s32 %s10, %s17
      %p19 = scmp.eq.s32.totalorder %s18, 0
      %s21 = sadd.s32 %s20, 1
      %s22 = scalar_select %p19, %s20, %s21
      %p25 = pneg %p19
      %p26 = scmp.eq.s32.totalorder %s10, 3
      %p27 = por %p25, %p26
      %p28 = scmp.ne.s32.totalorder %s20, %s23
      %p29 = scmp.eq.s32.totalorder %s10, 0
      %p30 = por %p28, %p29
      %p31 = scmp.ne.s32.totalorder %s20, %s23
      %p32 = scmp.eq.s32.totalorder %s15, 3
      %p33 = por %p31, %p32
      %p34 = scmp.ne.s32.totalorder %s23, %s24
      %p35 = scmp.eq.s32.totalorder %s15, 0
      %p36 = por %p34, %p35
      %p37 = scmp.ne.s32.totalorder %s23, %s24
      %p38 = scmp.eq.s32.totalorder %s16, 3
      %p39 = por %p37, %p38
      %p41 = scmp.ne.s32.totalorder %s24, %s40
      %p42 = scmp.eq.s32.totalorder %s16, 0
      %p43 = por %p41, %p42
      %s45 = sadd.s32 %s44, 1
      %p48 = scmp.eq.s32.totalorder %s10, 3
      %p49 = scmp.ne.s32.totalorder %s44, %s46
      %p50 = scmp.eq.s32.totalorder %s10, 0
      %p51 = por %p49, %p50
      %p52 = scmp.ne.s32.totalorder %s44, %s46
      %p53 = scmp.eq.s32.totalorder %s15, 3
      %p54 = por %p52, %p53
      %p55 = scmp.ne.s32.totalorder %s46, %s47
      %p56 = scmp.eq.s32.totalorder %s15, 0
      %p57 = por %p55, %p56
      %p58 = scmp.ne.s32.totalorder %s46, %s47
      %p59 = scmp.eq.s32.totalorder %s16, 3
      %p60 = por %p58, %p59
      %p62 = scmp.ne.s32.totalorder %s47, %s61
      %p63 = scmp.eq.s32.totalorder %s16, 0
      %p64 = por %p62, %p63
      %s66 = sadd.s32 %s65, 1
      %p69 = scmp.eq.s32.totalorder %s10, 3
      %p70 = scmp.ne.s32.totalorder %s65, %s67
      %p71 = scmp.eq.s32.totalorder %s10, 0
      %p72 = por %p70, %p71
      %p73 = scmp.ne.s32.totalorder %s65, %s67
      %p74 = scmp.eq.s32.totalorder %s15, 3
      %p75 = por %p73, %p74
      %p76 = scmp.ne.s32.totalorder %s67, %s68
      %p77 = scmp.eq.s32.totalorder %s15, 0
      %p78 = por %p76, %p77
      %p79 = scmp.ne.s32.totalorder %s67, %s68
      %p80 = scmp.eq.s32.totalorder %s16, 3
      %p81 = por %p79, %p80
      %p83 = scmp.ne.s32.totalorder %s68, %s82
      %p84 = scmp.eq.s32.totalorder %s16, 0
      %p85 = por %p83, %p84
      %s86 = ssub.s32 %s10, %s17
      %p87 = scmp.eq.s32.totalorder %s86, 0
      %s89 = sadd.s32 %s88, 1
      %s90 = scalar_select %p87, %s88, %s89
      %p93 = pneg %p87
      %p94 = scmp.eq.s32.totalorder %s10, 3
      %p95 = por %p93, %p94
      %p96 = scmp.ne.s32.totalorder %s88, %s91
      %p97 = scmp.eq.s32.totalorder %s10, 0
      %p98 = por %p96, %p97
      %p99 = scmp.ne.s32.totalorder %s88, %s91
      %p100 = scmp.eq.s32.totalorder %s15, 3
      %p101 = por %p99, %p100
      %p102 = scmp.ne.s32.totalorder %s91, %s92
      %p103 = scmp.eq.s32.totalorder %s15, 0
      %p104 = por %p102, %p103
      %p105 = scmp.ne.s32.totalorder %s91, %s92
      %p106 = scmp.eq.s32.totalorder %s16, 3
      %p107 = por %p105, %p106
      %p109 = scmp.ne.s32.totalorder %s92, %s108
      %p110 = scmp.eq.s32.totalorder %s16, 0
      %p111 = por %p109, %p110
      %p112 = scmp.le.s32.totalorder 1, %s10
      %p113 = scmp.lt.s32.totalorder %s10, 5
      %p114 = pnand %p112, %p113
      %p115 = pneg %p114
      // Predicated region
      $region9: #{tpu_custom_call.1} parent=5 // pred_check
        _
      $region10: #{tpu_custom_call.1} parent=5 // pred_check_branch
        %117 = sbr.rel (%p114) target = $region12
      $region11: #{tpu_custom_call.1} parent=5 // pred_region
        %s118 = ssub.s32 %s10, 1
        // Predicated region
        $region13: #{tpu_custom_call.1} parent=11 // pred_check
          %p119 = pneg %p57
        $region14: #{tpu_custom_call.1} parent=11 // pred_check_branch
          %121 = sbr.rel (%p119) target = $region16
        $region15: #{tpu_custom_call.1} parent=11 // pred_region
          _
        $region16: #{tpu_custom_call.1} parent=11 // pred_fallthru
          _
        // Predicated region
        $region17: #{tpu_custom_call.1} parent=11 // pred_check
          %p122 = pneg %p78
        $region18: #{tpu_custom_call.1} parent=11 // pred_check_branch
          %124 = sbr.rel (%p122) target = $region20
        $region19: #{tpu_custom_call.1} parent=11 // pred_region
          _
        $region20: #{tpu_custom_call.1} parent=11 // pred_fallthru
          _
      $region12: #{tpu_custom_call.1} parent=5 // pred_fallthru
        _
      %p125 = scmp.lt.s32.totalorder %s10, 4
      // Predicated region
      $region21: #{tpu_custom_call.1} parent=5 // pred_check
        %p126 = pneg %p125
      $region22: #{tpu_custom_call.1} parent=5 // pred_check_branch
        %128 = sbr.rel (%p126) target = $region24
      $region23: #{tpu_custom_call.1} parent=5 // pred_region
        // Predicated region
        $region25: #{tpu_custom_call.1} parent=23 // pred_check
          %p129 = pneg %p30
        $region26: #{tpu_custom_call.1} parent=23 // pred_check_branch
          %131 = sbr.rel (%p129) target = $region28
        $region27: #{tpu_custom_call.1} parent=23 // pred_region
          %s132 = smul.u32 2, %s10
          %s133 = ssub.s32 7, %s132
          %p134 = scmp.lt.s32.totalorder %s133, 2
          %s135 = scalar_select %p134, %s133, 2
          %s136 = smul.u32 128, %s135
          %p137 = scmp.lt.s32.totalorder %s132, 6
          %s138 = scalar_select %p137, %s132, 6
          %s139 = smul.addr %s138, 8
          %s140 = scalar_lea.vmem %s0, %s139
          %s141 = smul.u32 2, %s10
          %s142 = ssub.s32 7, %s141
          %p143 = scmp.lt.s32.totalorder %s142, 2
          %s144 = scalar_select %p143, %s142, 2
          %s145 = smul.u32 128, %s144
        $region28: #{tpu_custom_call.1} parent=23 // pred_fallthru
          _
      $region24: #{tpu_custom_call.1} parent=5 // pred_fallthru
        _
      %p146 = scmp.le.s32.totalorder 1, %s10
      %p147 = scmp.lt.s32.totalorder %s10, 5
      %p148 = pnand %p146, %p147
      %p149 = pneg %p148
      // Predicated region
      $region29: #{tpu_custom_call.1} parent=5 // pred_check
        _
      $region30: #{tpu_custom_call.1} parent=5 // pred_check_branch
        %151 = sbr.rel (%p148) target = $region32
      $region31: #{tpu_custom_call.1} parent=5 // pred_region
        %s152 = ssub.s32 %s10, 1
        %s153 = smul.u32 2, %s15
        %s154 = ssub.s32 7, %s153
        %p155 = scmp.lt.s32.totalorder %s154, 2
        %s156 = scalar_select %p155, %s154, 2
        %s157 = smul.u32 128, %s156
        %p158 = scmp.lt.s32.totalorder %s153, 6
        %s159 = scalar_select %p158, %s153, 6
        %s160 = smul.addr %s159, 8
        %s161 = scalar_lea.vmem %s0, %s160
        %p162 = pneg %p36
        %p163 = pneg %p33
        %p164 = pneg %p57
        %p165 = pneg %p54
        %p166 = pneg %p78
        %p167 = pneg %p75
        %p168 = pneg %p104
        %p169 = pneg %p101
        %s170 = sand.u32 %s91, 1
        %s171 = sand.u32 %s91, 1
        %s172 = smul.addr %s171, 16
        %s173 = scalar_lea.vmem [#allocation3], %s172
        %s174 = smul.u32 2, %s15
        %s175 = ssub.s32 7, %s174
        %p176 = scmp.lt.s32.totalorder %s175, 2
        %s177 = scalar_select %p176, %s175, 2
        %s178 = smul.u32 128, %s177
        %p179 = scmp.lt.s32.totalorder %s174, 6
        %s180 = scalar_select %p179, %s174, 6
        %s181 = smul.addr %s180, 8
        %s182 = scalar_lea.vmem %s0, %s181
        %s183 = smul.u32 2, %s15
        %s184 = ssub.s32 7, %s183
        %p185 = scmp.lt.s32.totalorder %s184, 2
        %s186 = scalar_select %p185, %s184, 2
        %s187 = smul.u32 128, %s186
        %s188 = smul.u32 2, %s15
        %s189 = ssub.s32 7, %s188
        %p190 = scmp.lt.s32.totalorder %s189, 2
        %s191 = scalar_select %p190, %s189, 2
        %s192 = smul.u32 128, %s191
        %v193 = vld [vmem:[%s182] sm:$0xff]
        %v194 = vld [vmem:[%s182 + $0x8] sm:$0xff]
        %v195 = vld [vmem:[%s1] sm:$0x1]
        %v197 = vlaneseq
        %v198 = vshrl.u32 %v197, 7
        %v199 = vsub.s32 0, %v198
        %v200 = vrot.slane %v195, %v199
        %v202 = vmul.f32 %v193, %v200
        %v203 = vmul.f32 %v194, %v200
        %vm204 = vcmask 261120
        %v205 = vsel %vm204, %v202, 0.0
        %206 = vadd.xlane.f32.xlu0 %v205
        %v207 = vpop.xlane.xlu0 %206
        %v208 = vsel %vm204, %v203, 0.0
        %209 = vadd.xlane.f32.xlu0 %v208
        %v210 = vpop.xlane.xlu0 %209
        %s211 = sld [smem:[#allocation2]]
        %v212 = vstv %s211
        %v213 = vadd.f32 %v207, %v212
        %v214 = vadd.f32 %v210, %v212
        %vm215 = vcmask 7168
        %216 = vst.msk [vmem:[%s173] sm:$0xff] %vm215, %v213
        %217 = vst.msk [vmem:[%s173 + $0x8] sm:$0xff] %vm215, %v214
        %s218 = sand.u32 %s91, 1
        %s219 = sand.u32 %s91, 1
        %s220 = smul.addr %s219, 16
        %s221 = scalar_lea.vmem [#allocation3], %s220
        // Predicated region
        $region33: #{tpu_custom_call.1} parent=31 // pred_check
          %p222 = pneg %p101
        $region34: #{tpu_custom_call.1} parent=31 // pred_check_branch
          %224 = sbr.rel (%p222) target = $region36
        $region35: #{tpu_custom_call.1} parent=31 // pred_region
          %s225 = smul.u32 2, %s15
          %s226 = ssub.s32 7, %s225
          %p227 = scmp.lt.s32.totalorder %s226, 2
          %s228 = scalar_select %p227, %s226, 2
          %s229 = smul.u32 128, %s228
          %p230 = scmp.ne.s32.totalorder 0, %s229
          %s231 = smul.addr %s225, 8
          %s232 = scalar_lea.vmem %s3, %s231
          // Predicated region
          $region37: #{tpu_custom_call.1} parent=35 // pred_check
            %p233 = pneg %p230
          $region38: #{tpu_custom_call.1} parent=35 // pred_check_branch
            %235 = sbr.rel (%p233) target = $region40
          $region39: #{tpu_custom_call.1} parent=35 // pred_region
            // Predicated region
            $region41: #{tpu_custom_call.1} parent=39 // pred_check
              _
            $region42: #{tpu_custom_call.1} parent=39 // pred_check_branch
              %237 = sbr.rel (0) target = $region44
            $region43: #{tpu_custom_call.1} parent=39 // pred_region
              // Predicated region
              $region63: #{tpu_custom_call.1} parent=43 // pred_check
                _
              $region64: #{tpu_custom_call.1} parent=43 // pred_check_branch
                %288 = sbr.rel (0) target = $region66
              $region65: #{tpu_custom_call.1} parent=43 // pred_region
                %s289 = sshrl.u32 %s228, 1
                // While loop
                $region67: #{tpu_custom_call.1} parent=65 // loop_pre_header
                  _
                $region68: #{tpu_custom_call.1} parent=65 // loop_header
                  %s291 = sphi 0, %s293
                  %p292 = scmp.ge.s32.totalorder %s291, %s289
                  %s296 = sphi 0, %s305
                  %s297 = sphi %s221, %s308
                  %s298 = sphi %s232, %s309
                $region69: #{tpu_custom_call.1} parent=65 // loop_header_branch
                  %295 = sbr.rel (%p292) target = $region73
                $region70: #{tpu_custom_call.1} parent=65 // loop_body
                  %v299 = vld [vmem:[%s297] sm:$0xff]
                  %300 = vst [vmem:[%s298] sm:$0xff] %v299
                  %v301 = vld [vmem:[%s297 + $0x8] sm:$0xff]
                  %302 = vst [vmem:[%s298 + $0x8] sm:$0xff] %v301
                  %s303 = sadd.s32 1, %s296
                  %p304 = scmp.ge.s32.totalorder %s303, %s289
                  %s305 = scalar_select %p304, 0, %s303
                  %s306 = smul.u32 %s305, 16
                  %s307 = smul.u32 %s305, 16
                  %s308 = scalar_lea.vmem %s221, %s306 [#allocation3]
                  %s309 = scalar_lea.vmem %s232, %s307
                $region71: #{tpu_custom_call.1} parent=65 // loop_footer
                  %s293 = sadd.s32 %s291, 1
                $region72: #{tpu_custom_call.1} parent=65 // loop_footer_branch
                  %290 = sbr.rel target = $region68
                $region73: #{tpu_custom_call.1} parent=65 // loop_exit
                  _
                %s310 = sshrl.u32 %s228, 1
                %s311 = sand.u32 %s228, 1
                %s312 = smul.u32 %s310, 2
                %s313 = smul.u32 8, %s312
                %s314 = scalar_lea.vmem %s221, %s313 [#allocation3]
                %s315 = smul.u32 8, %s312
                %s316 = scalar_lea.vmem %s232, %s315
                // While loop
                $region74: #{tpu_custom_call.1} parent=65 // loop_pre_header
                  _
                $region75: #{tpu_custom_call.1} parent=65 // loop_header
                  %s318 = sphi 0, %s320
                  %p319 = scmp.ge.s32.totalorder %s318, %s311
                  %s323 = sphi 0, %s330
                  %s324 = sphi %s314, %s333
                  %s325 = sphi %s316, %s334
                $region76: #{tpu_custom_call.1} parent=65 // loop_header_branch
                  %322 = sbr.rel (%p319) target = $region80
                $region77: #{tpu_custom_call.1} parent=65 // loop_body
                  %v326 = vld [vmem:[%s324] sm:$0xff]
                  %327 = vst [vmem:[%s325] sm:$0xff] %v326
                  %s328 = sadd.s32 1, %s323
                  %p329 = scmp.ge.s32.totalorder %s328, %s311
                  %s330 = scalar_select %p329, 0, %s328
                  %s331 = smul.u32 %s330, 8
                  %s332 = smul.u32 %s330, 8
                  %s333 = scalar_lea.vmem %s314, %s331 [#allocation3]
                  %s334 = scalar_lea.vmem %s316, %s332
                $region78: #{tpu_custom_call.1} parent=65 // loop_footer
                  %s320 = sadd.s32 %s318, 1
                $region79: #{tpu_custom_call.1} parent=65 // loop_footer_branch
                  %317 = sbr.rel target = $region75
                $region80: #{tpu_custom_call.1} parent=65 // loop_exit
                  _
              $region66: #{tpu_custom_call.1} parent=43 // pred_fallthru
                _
              // Predicated region
              $region81: #{tpu_custom_call.1} parent=43 // pred_check
                _
              $region82: #{tpu_custom_call.1} parent=43 // pred_check_branch
                %336 = sbr.rel target = $region84
              $region83: #{tpu_custom_call.1} parent=43 // pred_region
                _
              $region84: #{tpu_custom_call.1} parent=43 // pred_fallthru
                _
            $region44: #{tpu_custom_call.1} parent=39 // pred_fallthru
              _
            // Predicated region
            $region45: #{tpu_custom_call.1} parent=39 // pred_check
              _
            $region46: #{tpu_custom_call.1} parent=39 // pred_check_branch
              %239 = sbr.rel target = $region48
            $region47: #{tpu_custom_call.1} parent=39 // pred_region
              %s241 = sshrl.u32 %s228, 1
              // While loop
              $region49: #{tpu_custom_call.1} parent=47 // loop_pre_header
                _
              $region50: #{tpu_custom_call.1} parent=47 // loop_header
                %s243 = sphi 0, %s245
                %p244 = scmp.ge.s32.totalorder %s243, %s241
                %s248 = sphi 0, %s257
                %s249 = sphi %s221, %s260
                %s250 = sphi %s232, %s261
              $region51: #{tpu_custom_call.1} parent=47 // loop_header_branch
                %247 = sbr.rel (%p244) target = $region55
              $region52: #{tpu_custom_call.1} parent=47 // loop_body
                %v251 = vld [vmem:[%s249] sm:$0xff]
                %252 = vst [vmem:[%s250] sm:$0xff] %v251
                %v253 = vld [vmem:[%s249 + $0x8] sm:$0xff]
                %254 = vst [vmem:[%s250 + $0x8] sm:$0xff] %v253
                %s255 = sadd.s32 1, %s248
                %p256 = scmp.ge.s32.totalorder %s255, %s241
                %s257 = scalar_select %p256, 0, %s255
                %s258 = smul.u32 %s257, 16
                %s259 = smul.u32 %s257, 16
                %s260 = scalar_lea.vmem %s221, %s258 [#allocation3]
                %s261 = scalar_lea.vmem %s232, %s259
              $region53: #{tpu_custom_call.1} parent=47 // loop_footer
                %s245 = sadd.s32 %s243, 1
              $region54: #{tpu_custom_call.1} parent=47 // loop_footer_branch
                %242 = sbr.rel target = $region50
              $region55: #{tpu_custom_call.1} parent=47 // loop_exit
                _
              %s262 = sshrl.u32 %s228, 1
              %s263 = sand.u32 %s228, 1
              %s264 = smul.u32 %s262, 2
              %s265 = smul.u32 8, %s264
              %s266 = scalar_lea.vmem %s221, %s265 [#allocation3]
              %s267 = smul.u32 8, %s264
              %s268 = scalar_lea.vmem %s232, %s267
              // While loop
              $region56: #{tpu_custom_call.1} parent=47 // loop_pre_header
                _
              $region57: #{tpu_custom_call.1} parent=47 // loop_header
                %s270 = sphi 0, %s272
                %p271 = scmp.ge.s32.totalorder %s270, %s263
                %s275 = sphi 0, %s282
                %s276 = sphi %s266, %s285
                %s277 = sphi %s268, %s286
              $region58: #{tpu_custom_call.1} parent=47 // loop_header_branch
                %274 = sbr.rel (%p271) target = $region62
              $region59: #{tpu_custom_call.1} parent=47 // loop_body
                %v278 = vld [vmem:[%s276] sm:$0xff]
                %279 = vst [vmem:[%s277] sm:$0xff] %v278
                %s280 = sadd.s32 1, %s275
                %p281 = scmp.ge.s32.totalorder %s280, %s263
                %s282 = scalar_select %p281, 0, %s280
                %s283 = smul.u32 %s282, 8
                %s284 = smul.u32 %s282, 8
                %s285 = scalar_lea.vmem %s266, %s283 [#allocation3]
                %s286 = scalar_lea.vmem %s268, %s284
              $region60: #{tpu_custom_call.1} parent=47 // loop_footer
                %s272 = sadd.s32 %s270, 1
              $region61: #{tpu_custom_call.1} parent=47 // loop_footer_branch
                %269 = sbr.rel target = $region57
              $region62: #{tpu_custom_call.1} parent=47 // loop_exit
                _
            $region48: #{tpu_custom_call.1} parent=39 // pred_fallthru
              _
          $region40: #{tpu_custom_call.1} parent=35 // pred_fallthru
            _
          %337 = vnop
        $region36: #{tpu_custom_call.1} parent=31 // pred_fallthru
          _
      $region32: #{tpu_custom_call.1} parent=5 // pred_fallthru
        _
      %p338 = scmp.le.s32.totalorder 2, %s10
      // Predicated region
      $region85: #{tpu_custom_call.1} parent=5 // pred_check
        %p339 = pneg %p338
      $region86: #{tpu_custom_call.1} parent=5 // pred_check_branch
        %341 = sbr.rel (%p339) target = $region88
      $region87: #{tpu_custom_call.1} parent=5 // pred_region
        %s342 = ssub.s32 %s10, 2
        // Predicated region
        $region89: #{tpu_custom_call.1} parent=87 // pred_check
          %p343 = pneg %p107
        $region90: #{tpu_custom_call.1} parent=87 // pred_check_branch
          %345 = sbr.rel (%p343) target = $region92
        $region91: #{tpu_custom_call.1} parent=87 // pred_region
          %s346 = sand.u32 %s92, 1
          %s347 = sand.u32 %s92, 1
          %s348 = smul.addr %s347, 16
          %s349 = scalar_lea.vmem [#allocation3], %s348
        $region92: #{tpu_custom_call.1} parent=87 // pred_fallthru
          _
      $region88: #{tpu_custom_call.1} parent=5 // pred_fallthru
        _
    $region6: #{tpu_custom_call.1} parent=1 // loop_footer
      %s14 = sadd.s32 1, %s10
    $region7: #{tpu_custom_call.1} parent=1 // loop_footer_branch
      %9 = sbr.rel target = $region3
    $region8: #{tpu_custom_call.1} parent=1 // loop_exit
      _

</llo_original>
